<compile_context>
chip_gen: v7x
topology: tpu7x:2x2x1
jax: 0.10.0
libtpu: 0.0.40
codegen_flags: <defaults>
</compile_context>

<pallas_src>
import functools

import jax
import jax.numpy as jnp
from jax.experimental import pallas as pl
from jax.experimental.pallas import tpu as pltpu

# --- module hyper-params (small, consistent with MultiPositionRotary) ---
N = 2            # batch
T = 8            # sequence length
NHEADS = 4
HEAD_DIM = 8
POS_DIM = 3
NFREQS = HEAD_DIM // 2
MIN_FREQ = 0.1
MAX_FREQ = 10.0


def _rotary_kernel(xh_ref, yh_ref, pos_ref, freqs_ref, out_ref, *, pos_dim):
    # xh_ref / yh_ref : (NT, H*F)   first / second half of head_dim, heads packed along lanes
    # pos_ref         : (NT, P)
    # freqs_ref       : (P, H*F)    pre-transposed, pre-scaled by 1/P, pre-tiled per head
    # out_ref         : (NT, 2*H*F) = [ x_out(all heads) | y_out(all heads) ]
    xh = xh_ref[...].astype(jnp.float32)
    yh = yh_ref[...].astype(jnp.float32)
    pos = pos_ref[...].astype(jnp.float32)
    freqs = freqs_ref[...].astype(jnp.float32)

    # theta[t, c] = sum_p pos[t, p] * freqs_scaled[p, c]  — unrolled VPU FMAs (P is tiny);
    # the mean's 1/P is already folded into freqs in the wrapper.
    theta = pos[:, 0:1] * freqs[0:1, :]
    for q in range(1, pos_dim):
        theta = theta + pos[:, q:q + 1] * freqs[q:q + 1, :]

    cos = jnp.cos(theta)                      # (NT, H*F), angles already tiled per head
    sin = jnp.sin(theta)

    x_out = xh * cos - yh * sin
    y_out = xh * sin + yh * cos

    # single lane-dense store of the whole slab
    out_ref[...] = jnp.concatenate([x_out, y_out], axis=-1).astype(out_ref.dtype)


def multi_position_rotary(x_NTHD, pos_NTP, freqs_FP):
    n, t, h, d = x_NTHD.shape
    p = pos_NTP.shape[-1]
    f = d // 2
    nt = n * t

    # wrapper-side layout plumbing (cheap XLA ops, done once):
    xh = x_NTHD[..., :f].reshape(nt, h * f)                 # (NT, H*F) first halves
    yh = x_NTHD[..., f:].reshape(nt, h * f)                 # (NT, H*F) second halves
    pos_flat = pos_NTP.reshape(nt, p)                       # (NT, P)
    freqs_PC = jnp.tile((freqs_FP / p).T, (1, h))           # (P, H*F): 1/P folded, per-head tiled

    kernel = functools.partial(_rotary_kernel, pos_dim=p)
    out_flat = pl.pallas_call(
        kernel,
        out_shape=jax.ShapeDtypeStruct((nt, 2 * h * f), x_NTHD.dtype),
        grid=(1,),                                          # whole tensor in one invocation
        in_specs=[
            pl.BlockSpec((nt, h * f), lambda i: (0, 0)),
            pl.BlockSpec((nt, h * f), lambda i: (0, 0)),
            pl.BlockSpec((nt, p), lambda i: (0, 0)),
            pl.BlockSpec((p, h * f), lambda i: (0, 0)),
        ],
        out_specs=pl.BlockSpec((nt, 2 * h * f), lambda i: (0, 0)),
        compiler_params=pltpu.CompilerParams(dimension_semantics=("arbitrary",)),
    )(xh, yh, pos_flat, freqs_PC)

    # re-interleave halves per head: (NT, 2, H, F) -> (N, T, H, 2*F = head_dim)
    out = out_flat.reshape(n, t, 2, h, f)
    out = jnp.transpose(out, (0, 1, 3, 2, 4)).reshape(n, t, h, d)
    return out


# ---------------- pure-JAX reference (mirrors the PyTorch forward) ----------------
def reference(x_NTHD, pos_NTP, freqs_FP):
    theta = (freqs_FP[None, None] * pos_NTP[:, :, None, :]).mean(-1)          # (N, T, F)
    cos = jnp.cos(theta)[..., None, :]
    sin = jnp.sin(theta)[..., None, :]
    xh = x_NTHD[..., :NFREQS].astype(jnp.float32)
    yh = x_NTHD[..., NFREQS:].astype(jnp.float32)
    out = jnp.concatenate([xh * cos - yh * sin, xh * sin + yh * cos], axis=-1)
    return out.astype(x_NTHD.dtype)


if __name__ == "__main__":
    key = jax.random.PRNGKey(0)
    k_x, k_pos, k_freq = jax.random.split(key, 3)

    # --- inputs ---
    x_NTHD = jax.random.normal(k_x, (N, T, NHEADS, HEAD_DIM), dtype=jnp.float32)
    pos_NTP = jax.random.normal(k_pos, (N, T, POS_DIM), dtype=jnp.float32)

    # --- freqs parameter, same construction as MultiPositionRotary.__init__ ---
    freqs = jax.random.normal(k_freq, (NFREQS, POS_DIM), dtype=jnp.float32)
    freqs = freqs / jnp.sqrt(jnp.mean(freqs ** 2, axis=1, keepdims=True) + 1e-7)
    band = MIN_FREQ * (MAX_FREQ / MIN_FREQ) ** jnp.linspace(0.0, 1.0, NFREQS)
    freqs = freqs * band[:, None]

    out = multi_position_rotary(x_NTHD, pos_NTP, freqs)
    out = jax.block_until_ready(out)

    ref = reference(x_NTHD, pos_NTP, freqs)
    assert out.shape == (N, T, NHEADS, HEAD_DIM) and out.dtype == jnp.float32
    assert jnp.allclose(out, ref, rtol=1e-4, atol=1e-4), "mismatch vs pure-JAX reference"

    print("KERNEL_OK")
</pallas_src>

<mosaic_0001>
module attributes {stable_mosaic.version = 11 : i64} {
  func.func @_rotary_kernel(%arg0: i32, %arg1: memref<16x16xf32, #tpu.memory_space<vmem>>, %arg2: memref<16x16xf32, #tpu.memory_space<vmem>>, %arg3: memref<16x3xf32, #tpu.memory_space<vmem>>, %arg4: memref<3x16xf32, #tpu.memory_space<vmem>>, %arg5: memref<16x32xf32, #tpu.memory_space<vmem>>) attributes {dimension_semantics = [#tpu.dimension_semantics<arbitrary>], iteration_bounds = array<i64: 1>, scalar_prefetch = 0 : i64, scratch_operands = 0 : i64, tpu.core_type = #tpu.core_type<tc>, window_params = [{pipeline_mode = #tpu.pipeline_mode<synchronous>, transform_indices = @transform_0, window_bounds = array<i64: 16, 16>}, {pipeline_mode = #tpu.pipeline_mode<synchronous>, transform_indices = @transform_1, window_bounds = array<i64: 16, 16>}, {pipeline_mode = #tpu.pipeline_mode<synchronous>, transform_indices = @transform_2, window_bounds = array<i64: 16, 3>}, {pipeline_mode = #tpu.pipeline_mode<synchronous>, transform_indices = @transform_3, window_bounds = array<i64: 3, 16>}, {pipeline_mode = #tpu.pipeline_mode<synchronous>, transform_indices = @transform_4, window_bounds = array<i64: 16, 32>}]} {
    %c0 = arith.constant 0 : index
    %c0_0 = arith.constant 0 : index
    %0 = vector.load %arg1[%c0, %c0_0] : memref<16x16xf32, #tpu.memory_space<vmem>>, vector<16x16xf32>
    %c0_1 = arith.constant 0 : index
    %c0_2 = arith.constant 0 : index
    %1 = vector.load %arg2[%c0_1, %c0_2] : memref<16x16xf32, #tpu.memory_space<vmem>>, vector<16x16xf32>
    %c0_3 = arith.constant 0 : index
    %c0_4 = arith.constant 0 : index
    %2 = vector.load %arg3[%c0_3, %c0_4] : memref<16x3xf32, #tpu.memory_space<vmem>>, vector<16x3xf32>
    %c0_5 = arith.constant 0 : index
    %c0_6 = arith.constant 0 : index
    %3 = vector.load %arg4[%c0_5, %c0_6] : memref<3x16xf32, #tpu.memory_space<vmem>>, vector<3x16xf32>
    %4 = vector.extract_strided_slice %2 {offsets = [0, 0], sizes = [16, 1], strides = [1, 1]} : vector<16x3xf32> to vector<16x1xf32>
    %5 = vector.extract_strided_slice %3 {offsets = [0, 0], sizes = [1, 16], strides = [1, 1]} : vector<3x16xf32> to vector<1x16xf32>
    %6 = vector.broadcast %4 : vector<16x1xf32> to vector<16x16xf32>
    %7 = vector.broadcast %5 : vector<1x16xf32> to vector<16x16xf32>
    %8 = arith.mulf %6, %7 : vector<16x16xf32>
    %9 = vector.extract_strided_slice %2 {offsets = [0, 1], sizes = [16, 1], strides = [1, 1]} : vector<16x3xf32> to vector<16x1xf32>
    %10 = vector.extract_strided_slice %3 {offsets = [1, 0], sizes = [1, 16], strides = [1, 1]} : vector<3x16xf32> to vector<1x16xf32>
    %11 = vector.broadcast %9 : vector<16x1xf32> to vector<16x16xf32>
    %12 = vector.broadcast %10 : vector<1x16xf32> to vector<16x16xf32>
    %13 = arith.mulf %11, %12 : vector<16x16xf32>
    %14 = arith.addf %8, %13 : vector<16x16xf32>
    %15 = vector.extract_strided_slice %2 {offsets = [0, 2], sizes = [16, 1], strides = [1, 1]} : vector<16x3xf32> to vector<16x1xf32>
    %16 = vector.extract_strided_slice %3 {offsets = [2, 0], sizes = [1, 16], strides = [1, 1]} : vector<3x16xf32> to vector<1x16xf32>
    %17 = vector.broadcast %15 : vector<16x1xf32> to vector<16x16xf32>
    %18 = vector.broadcast %16 : vector<1x16xf32> to vector<16x16xf32>
    %19 = arith.mulf %17, %18 : vector<16x16xf32>
    %20 = arith.addf %14, %19 : vector<16x16xf32>
    %21 = math.cos %20 : vector<16x16xf32>
    %22 = math.sin %20 : vector<16x16xf32>
    %23 = arith.mulf %0, %21 : vector<16x16xf32>
    %24 = arith.mulf %1, %22 : vector<16x16xf32>
    %25 = arith.subf %23, %24 : vector<16x16xf32>
    %26 = arith.mulf %0, %22 : vector<16x16xf32>
    %27 = arith.mulf %1, %21 : vector<16x16xf32>
    %28 = arith.addf %26, %27 : vector<16x16xf32>
    %29 = tpu.concatenate %25, %28 in 1 : vector<16x16xf32>, vector<16x16xf32> -> vector<16x32xf32>
    %c0_7 = arith.constant 0 : index
    %c0_8 = arith.constant 0 : index
    %30 = vector.load %arg5[%c0_7, %c0_8] : memref<16x32xf32, #tpu.memory_space<vmem>>, vector<16x32xf32>
    tpu.vector_store %arg5[%c0_7, %c0_8], %29 {strides = array<i32>} : memref<16x32xf32, #tpu.memory_space<vmem>>, vector<16x32xf32>,
    return
  }
  func.func @transform_0(%arg0: i32) -> (i32, i32) {
    %c0_i32 = arith.constant 0 : i32
    %c0_i32_0 = arith.constant 0 : i32
    %c0_i32_1 = arith.constant 0 : i32
    return %c0_i32, %c0_i32_0 : i32, i32
  }
  func.func @transform_1(%arg0: i32) -> (i32, i32) {
    %c0_i32 = arith.constant 0 : i32
    %c0_i32_0 = arith.constant 0 : i32
    %c0_i32_1 = arith.constant 0 : i32
    return %c0_i32, %c0_i32_0 : i32, i32
  }
  func.func @transform_2(%arg0: i32) -> (i32, i32) {
    %c0_i32 = arith.constant 0 : i32
    %c0_i32_0 = arith.constant 0 : i32
    %c0_i32_1 = arith.constant 0 : i32
    return %c0_i32, %c0_i32_0 : i32, i32
  }
  func.func @transform_3(%arg0: i32) -> (i32, i32) {
    %c0_i32 = arith.constant 0 : i32
    %c0_i32_0 = arith.constant 0 : i32
    %c0_i32_1 = arith.constant 0 : i32
    return %c0_i32, %c0_i32_0 : i32, i32
  }
  func.func @transform_4(%arg0: i32) -> (i32, i32) {
    %c0_i32 = arith.constant 0 : i32
    %c0_i32_0 = arith.constant 0 : i32
    %c0_i32_1 = arith.constant 0 : i32
    return %c0_i32, %c0_i32_0 : i32, i32
  }
}

</mosaic_0001>

<llo_original>
// kernel: tpu_custom_call.1
$region0: #{tpu_custom_call.1}
  #allocation0 [shape = 'u32[]', space=smem, size = 0x4, offset = 0x4, fixed_abs, tag = 'smem constant byte address 0x4 - core index']
  #allocation1 [shape = 'u32[144,128]{1,0:T(1,128)}', space=vmem, size = 0x12000, scoped, tag = 'internal scratch']
  %s0 = inlined_call_operand.vmem [shape: f32[16,16], index: 0, kind: input, shape index: {}]
  %s1 = inlined_call_operand.hbm [shape: f32[16,16], index: 1, kind: input, shape index: {}]
  %s2 = inlined_call_operand.vmem [shape: f32[16,3], index: 2, kind: input, shape index: {}]
  %s3 = inlined_call_operand.vmem [shape: f32[3,16], index: 3, kind: input, shape index: {}]
  %s4 = inlined_call_operand.hbm [shape: f32[16,32], index: 4, kind: output, shape index: {}]
  %s5 = sld [smem:[#allocation0]]
  $region30: #{tpu_custom_call.1} parent=0
    _
  %s7 = ssub.s32 1, %s5
  %s8 = scalar_select 0, %s7, %s5
  $region1: #{tpu_custom_call.1} parent=0
    #allocation2 [shape = 'u8[8192]{0}', space=vmem, size = 0x2000, scoped, tag = 'input window, operand 1, single buffered']
    #allocation3 [shape = 's32[1]{0}', space=sflag, size = 0x4, scoped, tag = 'scoped memory for tpu_custom_call.1']
    #allocation4 [shape = 's32[1]{0}', space=sflag, size = 0x4, scoped, tag = 'scoped memory for tpu_custom_call.1']
    #allocation5 [shape = 'u8[8192]{0}', space=vmem, size = 0x2000, scoped, tag = 'output window, operand 0, single buffered']
    %9 = vsyncpa [#allocation3], 0
    %10 = vsyncpa [#allocation4], 0
    // Predicated region
    $region2: #{tpu_custom_call.1} parent=1 // pred_check
      _
    $region3: #{tpu_custom_call.1} parent=1 // pred_check_branch
      %12 = sbr.rel (0) target = $region5
    $region4: #{tpu_custom_call.1} parent=1 // pred_region
      _
    $region5: #{tpu_custom_call.1} parent=1 // pred_fallthru
      _
    // Predicated region
    $region6: #{tpu_custom_call.1} parent=1 // pred_check
      _
    $region7: #{tpu_custom_call.1} parent=1 // pred_check_branch
      %14 = sbr.rel (0) target = $region9
    $region8: #{tpu_custom_call.1} parent=1 // pred_region
      %s16 = ssub.s32 256, 256
      %17 = vsyncadd [#allocation3], %s16
      %s18 = sshll.u32 [#allocation2], 4
      %s19 = int_to_ptr.vmem [resolvable:$true] %s18
      %24 = dma.hbm_to_vmem [thread:$0]  %s1, 256, %s19, [#allocation3], 128, 128, 8
    $region9: #{tpu_custom_call.1} parent=1 // pred_fallthru
      _
    // Predicated region
    $region10: #{tpu_custom_call.1} parent=1 // pred_check
      _
    $region11: #{tpu_custom_call.1} parent=1 // pred_check_branch
      %26 = sbr.rel (0) target = $region13
    $region12: #{tpu_custom_call.1} parent=1 // pred_region
      _
    $region13: #{tpu_custom_call.1} parent=1 // pred_fallthru
      _
    // Predicated region
    $region14: #{tpu_custom_call.1} parent=1 // pred_check
      _
    $region15: #{tpu_custom_call.1} parent=1 // pred_check_branch
      %28 = sbr.rel (0) target = $region17
    $region16: #{tpu_custom_call.1} parent=1 // pred_region
      _
    $region17: #{tpu_custom_call.1} parent=1 // pred_fallthru
      _
    // Predicated region
    $region18: #{tpu_custom_call.1} parent=1 // pred_check
      _
    $region19: #{tpu_custom_call.1} parent=1 // pred_check_branch
      %30 = sbr.rel (0) target = $region21
    $region20: #{tpu_custom_call.1} parent=1 // pred_region
      %31 = dma.done [#allocation3], 256
    $region21: #{tpu_custom_call.1} parent=1 // pred_fallthru
      _
    %v32 = vld [vmem:[%s0] sm:$0xff]
    %v33 = vld [vmem:[%s0 + $0x8] sm:$0xff]
    %v34 = vld [vmem:[#allocation2] sm:$0xff]
    %v35 = vld [vmem:[#allocation2 + $0x8] sm:$0xff]
    %v36 = vld [vmem:[%s2] sm:$0xff]
    %v37 = vld [vmem:[%s2 + $0x8] sm:$0xff]
    %v38 = vld [vmem:[%s3] sm:$0x7]
    %40 = vset.pattern.permute.xlu0 0
    %41 = vperm.xlu0 %40, %v36
    %v42 = vpop.permute.xlu0 %41
    %45 = vset.pattern.permute.xlu0 0
    %46 = vperm.xlu0 %45, %v37
    %v47 = vpop.permute.xlu0 %46
    %v49 = vlaneseq
    %v50 = vshrl.u32 %v49, 7
    %v51 = vsub.s32 0, %v50
    %v52 = vrot.slane %v38, %v51
    %v53 = vmul.f32 %v42, %v52
    %v54 = vmul.f32 %v47, %v52
    %55 = vset.pattern.permute.xlu0 1
    %56 = vperm.xlu0 %55, %v36
    %v57 = vpop.permute.xlu0 %56
    %59 = vset.pattern.permute.xlu0 1
    %60 = vperm.xlu0 %59, %v37
    %v61 = vpop.permute.xlu0 %60
    %v63 = vlaneseq
    %v64 = vshrl.u32 %v63, 7
    %v65 = vsub.s32 1, %v64
    %v66 = vrot.slane %v38, %v65
    %v67 = vmul.f32 %v57, %v66
    %v68 = vmul.f32 %v61, %v66
    %v69 = vadd.f32 %v53, %v67
    %v70 = vadd.f32 %v54, %v68
    %71 = vset.pattern.permute.xlu0 2
    %72 = vperm.xlu0 %71, %v36
    %v73 = vpop.permute.xlu0 %72
    %75 = vset.pattern.permute.xlu0 2
    %76 = vperm.xlu0 %75, %v37
    %v77 = vpop.permute.xlu0 %76
    %v79 = vlaneseq
    %v80 = vshrl.u32 %v79, 7
    %v81 = vsub.s32 2, %v80
    %v82 = vrot.slane %v38, %v81
    %v83 = vmul.f32 %v73, %v82
    %v84 = vmul.f32 %v77, %v82
    %v85 = vadd.f32 %v69, %v83
    %v86 = vadd.f32 %v70, %v84
    %v87 = vand.u32 2147483647, %v85
    %vm88 = vcmp.le.f32.partialorder %v87, 0.7853982
    %vm89 = vcmp.lt.s32.totalorder %v85, 0
    %v90 = vand.u32 %v85, 2139095040
    %v91 = vshrl.u32 %v90, 23
    %v92 = vsub.s32 %v91, 127
    %v93 = vand.u32 2147483647, %v85
    %v94 = vand.u32 %v93, 8388607
    %v95 = vor.u32 %v94, 8388608
    %v96 = vsub.s32 0, %v95
    %v97 = vadd.s32 %v92, 1
    %vm98 = vcmp.gt.s32.totalorder %v97, 0
    %v99 = vsel %vm98, %v97, 0
    %v100 = vshrl.u32 %v99, 5
    %v101 = vand.u32 %v99, 31
    %v102 = vsub.s32 32, %v101
    %v103 = vshrl.u32 683565275, %v102
    %v104 = vshll.u32 683565275, %v101
    %v105 = vshrl.u32 2475754826, %v102
    %v106 = vor.u32 %v104, %v105
    %v107 = vshll.u32 2475754826, %v101
    %v108 = vshrl.u32 2131351028, %v102
    %v109 = vor.u32 %v107, %v108
    %v110 = vshll.u32 2131351028, %v101
    %v111 = vshrl.u32 2102212464, %v102
    %v112 = vor.u32 %v110, %v111
    %v113 = vshll.u32 2102212464, %v101
    %v114 = vshrl.u32 920167782, %v102
    %v115 = vor.u32 %v113, %v114
    %v116 = vshll.u32 920167782, %v101
    %v117 = vshrl.u32 1326507024, %v102
    %v118 = vor.u32 %v116, %v117
    %vm119 = vcmp.lt.s32.totalorder %v100, 1
    %vm120 = vcmp.lt.s32.totalorder %v100, 2
    %vm121 = vcmp.lt.s32.totalorder %v100, 3
    %vm122 = vcmp.lt.s32.totalorder %v100, 4
    %v123 = vsel %vm119, %v103, %v106
    %v124 = vsel %vm122, %v112, 2102212464
    %v125 = vsel %vm121, %v109, %v124
    %v126 = vsel %vm120, %v123, %v125
    %v127 = vsel %vm119, %v106, %v109
    %v128 = vsel %vm122, %v115, 920167782
    %v129 = vsel %vm121, %v112, %v128
    %v130 = vsel %vm120, %v127, %v129
    %v131 = vsel %vm119, %v109, %v112
    %v132 = vsel %vm122, %v118, 1326507024
    %v133 = vsel %vm121, %v115, %v132
    %v134 = vsel %vm120, %v131, %v133
    %v135 = vshll.u32 %v95, 8
    %v136 = vmul.u32.u64.compose %v135, %v134
    %v137 = vextract.low.u32 %v136
    %v138 = vextract.high.u32 %v136
    %v139 = vmul.u32.u64.compose %v135, %v130
    %v140 = vextract.low.u32 %v139
    %v141 = vextract.high.u32 %v139
    %v142 = vmul.u32 %v135, %v126
    %v143 = vadd.s32 %v138, %v140
    %vm144 = vc.u32 %v138, %v140
    %v145 = vadd.s32 %v141, 1
    %v146 = vsel %vm144, %v145, %v141
    %v147 = vadd.s32 %v142, %v146
    %v148 = vadd.s32 %v147, 536870912
    %v149 = vshrl.u32 %v148, 30
    %v150 = vshll.u32 %v149, 30
    %v151 = vsub.s32 %v147, %v150
    %vm152 = vcmp.lt.s32.totalorder %v151, 0
    %v153 = vsub.s32 0, %v151
    %v154 = vsel %vm152, %v153, %v151
    %v155 = vclz %v154
    %v156 = vsub.s32 %v155, 2
    %vm157 = vcmp.gt.s32.totalorder 0, %v156
    %v158 = vsel %vm157, 0, %v156
    %v159 = vsub.s32 32, %v158
    %v160 = vshll.u32 %v151, %v158
    %v161 = vshrl.u32 %v143, %v159
    %v162 = vor.u32 %v160, %v161
    %v163 = vsub.s32 4294967266, %v158
    %v164 = vadd.s32 %v163, 127
    %v165 = vshll.u32 %v164, 23
    %v166 = vor.u32 4788187, %v165
    %v167 = vand.u32 2147483647, %v166
    %v169 = vcvt.s32.f32 %v162
    %v170 = vmul.f32 %v169, %v167
    %v171 = vxor.u32 %v170, 2147483648
    %v172 = vsel %vm89, %v171, %v170
    %v173 = vsub.s32 4, %v149
    %v174 = vsel %vm89, %v173, %v149
    %v175 = vsel %vm88, %v85, %v172
    %v176 = vsel %vm88, 0, %v174
    %v177 = vcosq.f32.pop %v175
    %v178 = vsinq.f32.pop %v175
    %vm179 = vweird.f32 %v85
    %v180 = vand.u32 %v176, 3
    %vm181 = vcmp.lt.s32.totalorder %v180, 2
    %vm182 = vcmp.eq.s32.totalorder %v180, 0
    %v183 = vxor.u32 %v178, 2147483648
    %v184 = vsel %vm182, %v177, %v183
    %vm185 = vcmp.eq.s32.totalorder %v180, 2
    %v186 = vxor.u32 %v177, 2147483648
    %v187 = vsel %vm185, %v186, %v178
    %v188 = vsel %vm181, %v184, %v187
    %v189 = vsel %vm179, nan, %v188
    %v190 = vand.u32 2147483647, %v86
    %vm191 = vcmp.le.f32.partialorder %v190, 0.7853982
    %vm192 = vcmp.lt.s32.totalorder %v86, 0
    %v193 = vand.u32 %v86, 2139095040
    %v194 = vshrl.u32 %v193, 23
    %v195 = vsub.s32 %v194, 127
    %v196 = vand.u32 2147483647, %v86
    %v197 = vand.u32 %v196, 8388607
    %v198 = vor.u32 %v197, 8388608
    %v199 = vsub.s32 0, %v198
    %v200 = vadd.s32 %v195, 1
    %vm201 = vcmp.gt.s32.totalorder %v200, 0
    %v202 = vsel %vm201, %v200, 0
    %v203 = vshrl.u32 %v202, 5
    %v204 = vand.u32 %v202, 31
    %v205 = vsub.s32 32, %v204
    %v206 = vshrl.u32 683565275, %v205
    %v207 = vshll.u32 683565275, %v204
    %v208 = vshrl.u32 2475754826, %v205
    %v209 = vor.u32 %v207, %v208
    %v210 = vshll.u32 2475754826, %v204
    %v211 = vshrl.u32 2131351028, %v205
    %v212 = vor.u32 %v210, %v211
    %v213 = vshll.u32 2131351028, %v204
    %v214 = vshrl.u32 2102212464, %v205
    %v215 = vor.u32 %v213, %v214
    %v216 = vshll.u32 2102212464, %v204
    %v217 = vshrl.u32 920167782, %v205
    %v218 = vor.u32 %v216, %v217
    %v219 = vshll.u32 920167782, %v204
    %v220 = vshrl.u32 1326507024, %v205
    %v221 = vor.u32 %v219, %v220
    %vm222 = vcmp.lt.s32.totalorder %v203, 1
    %vm223 = vcmp.lt.s32.totalorder %v203, 2
    %vm224 = vcmp.lt.s32.totalorder %v203, 3
    %vm225 = vcmp.lt.s32.totalorder %v203, 4
    %v226 = vsel %vm222, %v206, %v209
    %v227 = vsel %vm225, %v215, 2102212464
    %v228 = vsel %vm224, %v212, %v227
    %v229 = vsel %vm223, %v226, %v228
    %v230 = vsel %vm222, %v209, %v212
    %v231 = vsel %vm225, %v218, 920167782
    %v232 = vsel %vm224, %v215, %v231
    %v233 = vsel %vm223, %v230, %v232
    %v234 = vsel %vm222, %v212, %v215
    %v235 = vsel %vm225, %v221, 1326507024
    %v236 = vsel %vm224, %v218, %v235
    %v237 = vsel %vm223, %v234, %v236
    %v238 = vshll.u32 %v198, 8
    %v239 = vmul.u32.u64.compose %v238, %v237
    %v240 = vextract.low.u32 %v239
    %v241 = vextract.high.u32 %v239
    %v242 = vmul.u32.u64.compose %v238, %v233
    %v243 = vextract.low.u32 %v242
    %v244 = vextract.high.u32 %v242
    %v245 = vmul.u32 %v238, %v229
    %v246 = vadd.s32 %v241, %v243
    %vm247 = vc.u32 %v241, %v243
    %v248 = vadd.s32 %v244, 1
    %v249 = vsel %vm247, %v248, %v244
    %v250 = vadd.s32 %v245, %v249
    %v251 = vadd.s32 %v250, 536870912
    %v252 = vshrl.u32 %v251, 30
    %v253 = vshll.u32 %v252, 30
    %v254 = vsub.s32 %v250, %v253
    %vm255 = vcmp.lt.s32.totalorder %v254, 0
    %v256 = vsub.s32 0, %v254
    %v257 = vsel %vm255, %v256, %v254
    %v258 = vclz %v257
    %v259 = vsub.s32 %v258, 2
    %vm260 = vcmp.gt.s32.totalorder 0, %v259
    %v261 = vsel %vm260, 0, %v259
    %v262 = vsub.s32 32, %v261
    %v263 = vshll.u32 %v254, %v261
    %v264 = vshrl.u32 %v246, %v262
    %v265 = vor.u32 %v263, %v264
    %v266 = vsub.s32 4294967266, %v261
    %v267 = vadd.s32 %v266, 127
    %v268 = vshll.u32 %v267, 23
    %v269 = vor.u32 4788187, %v268
    %v270 = vand.u32 2147483647, %v269
    %v272 = vcvt.s32.f32 %v265
    %v273 = vmul.f32 %v272, %v270
    %v274 = vxor.u32 %v273, 2147483648
    %v275 = vsel %vm192, %v274, %v273
    %v276 = vsub.s32 4, %v252
    %v277 = vsel %vm192, %v276, %v252
    %v278 = vsel %vm191, %v86, %v275
    %v279 = vsel %vm191, 0, %v277
    %v280 = vcosq.f32.pop %v278
    %v281 = vsinq.f32.pop %v278
    %vm282 = vweird.f32 %v86
    %v283 = vand.u32 %v279, 3
    %vm284 = vcmp.lt.s32.totalorder %v283, 2
    %vm285 = vcmp.eq.s32.totalorder %v283, 0
    %v286 = vxor.u32 %v281, 2147483648
    %v287 = vsel %vm285, %v280, %v286
    %vm288 = vcmp.eq.s32.totalorder %v283, 2
    %v289 = vxor.u32 %v280, 2147483648
    %v290 = vsel %vm288, %v289, %v281
    %v291 = vsel %vm284, %v287, %v290
    %v292 = vsel %vm282, nan, %v291
    %v293 = vand.u32 2147483647, %v85
    %vm294 = vcmp.le.f32.partialorder %v293, 0.7853982
    %vm295 = vcmp.lt.s32.totalorder %v85, 0
    %v296 = vand.u32 %v85, 2139095040
    %v297 = vshrl.u32 %v296, 23
    %v298 = vsub.s32 %v297, 127
    %v299 = vand.u32 2147483647, %v85
    %v300 = vand.u32 %v299, 8388607
    %v301 = vor.u32 %v300, 8388608
    %v302 = vsub.s32 0, %v301
    %v303 = vadd.s32 %v298, 1
    %vm304 = vcmp.gt.s32.totalorder %v303, 0
    %v305 = vsel %vm304, %v303, 0
    %v306 = vshrl.u32 %v305, 5
    %v307 = vand.u32 %v305, 31
    %v308 = vsub.s32 32, %v307
    %v309 = vshrl.u32 683565275, %v308
    %v310 = vshll.u32 683565275, %v307
    %v311 = vshrl.u32 2475754826, %v308
    %v312 = vor.u32 %v310, %v311
    %v313 = vshll.u32 2475754826, %v307
    %v314 = vshrl.u32 2131351028, %v308
    %v315 = vor.u32 %v313, %v314
    %v316 = vshll.u32 2131351028, %v307
    %v317 = vshrl.u32 2102212464, %v308
    %v318 = vor.u32 %v316, %v317
    %v319 = vshll.u32 2102212464, %v307
    %v320 = vshrl.u32 920167782, %v308
    %v321 = vor.u32 %v319, %v320
    %v322 = vshll.u32 920167782, %v307
    %v323 = vshrl.u32 1326507024, %v308
    %v324 = vor.u32 %v322, %v323
    %vm325 = vcmp.lt.s32.totalorder %v306, 1
    %vm326 = vcmp.lt.s32.totalorder %v306, 2
    %vm327 = vcmp.lt.s32.totalorder %v306, 3
    %vm328 = vcmp.lt.s32.totalorder %v306, 4
    %v329 = vsel %vm325, %v309, %v312
    %v330 = vsel %vm328, %v318, 2102212464
    %v331 = vsel %vm327, %v315, %v330
    %v332 = vsel %vm326, %v329, %v331
    %v333 = vsel %vm325, %v312, %v315
    %v334 = vsel %vm328, %v321, 920167782
    %v335 = vsel %vm327, %v318, %v334
    %v336 = vsel %vm326, %v333, %v335
    %v337 = vsel %vm325, %v315, %v318
    %v338 = vsel %vm328, %v324, 1326507024
    %v339 = vsel %vm327, %v321, %v338
    %v340 = vsel %vm326, %v337, %v339
    %v341 = vshll.u32 %v301, 8
    %v342 = vmul.u32.u64.compose %v341, %v340
    %v343 = vextract.low.u32 %v342
    %v344 = vextract.high.u32 %v342
    %v345 = vmul.u32.u64.compose %v341, %v336
    %v346 = vextract.low.u32 %v345
    %v347 = vextract.high.u32 %v345
    %v348 = vmul.u32 %v341, %v332
    %v349 = vadd.s32 %v344, %v346
    %vm350 = vc.u32 %v344, %v346
    %v351 = vadd.s32 %v347, 1
    %v352 = vsel %vm350, %v351, %v347
    %v353 = vadd.s32 %v348, %v352
    %v354 = vadd.s32 %v353, 536870912
    %v355 = vshrl.u32 %v354, 30
    %v356 = vshll.u32 %v355, 30
    %v357 = vsub.s32 %v353, %v356
    %vm358 = vcmp.lt.s32.totalorder %v357, 0
    %v359 = vsub.s32 0, %v357
    %v360 = vsel %vm358, %v359, %v357
    %v361 = vclz %v360
    %v362 = vsub.s32 %v361, 2
    %vm363 = vcmp.gt.s32.totalorder 0, %v362
    %v364 = vsel %vm363, 0, %v362
    %v365 = vsub.s32 32, %v364
    %v366 = vshll.u32 %v357, %v364
    %v367 = vshrl.u32 %v349, %v365
    %v368 = vor.u32 %v366, %v367
    %v369 = vsub.s32 4294967266, %v364
    %v370 = vadd.s32 %v369, 127
    %v371 = vshll.u32 %v370, 23
    %v372 = vor.u32 4788187, %v371
    %v373 = vand.u32 2147483647, %v372
    %v375 = vcvt.s32.f32 %v368
    %v376 = vmul.f32 %v375, %v373
    %v377 = vxor.u32 %v376, 2147483648
    %v378 = vsel %vm295, %v377, %v376
    %v379 = vsub.s32 4, %v355
    %v380 = vsel %vm295, %v379, %v355
    %v381 = vsel %vm294, %v85, %v378
    %v382 = vsel %vm294, 0, %v380
    %v383 = vcosq.f32.pop %v381
    %v384 = vsinq.f32.pop %v381
    %vm385 = vweird.f32 %v85
    %v386 = vadd.s32 %v382, 3
    %v387 = vand.u32 %v386, 3
    %vm388 = vcmp.lt.s32.totalorder %v387, 2
    %vm389 = vcmp.eq.s32.totalorder %v387, 0
    %v390 = vxor.u32 %v384, 2147483648
    %v391 = vsel %vm389, %v383, %v390
    %vm392 = vcmp.eq.s32.totalorder %v387, 2
    %v393 = vxor.u32 %v383, 2147483648
    %v394 = vsel %vm392, %v393, %v384
    %v395 = vsel %vm388, %v391, %v394
    %v396 = vsel %vm385, nan, %v395
    %v397 = vand.u32 2147483647, %v86
    %vm398 = vcmp.le.f32.partialorder %v397, 0.7853982
    %vm399 = vcmp.lt.s32.totalorder %v86, 0
    %v400 = vand.u32 %v86, 2139095040
    %v401 = vshrl.u32 %v400, 23
    %v402 = vsub.s32 %v401, 127
    %v403 = vand.u32 2147483647, %v86
    %v404 = vand.u32 %v403, 8388607
    %v405 = vor.u32 %v404, 8388608
    %v406 = vsub.s32 0, %v405
    %v407 = vadd.s32 %v402, 1
    %vm408 = vcmp.gt.s32.totalorder %v407, 0
    %v409 = vsel %vm408, %v407, 0
    %v410 = vshrl.u32 %v409, 5
    %v411 = vand.u32 %v409, 31
    %v412 = vsub.s32 32, %v411
    %v413 = vshrl.u32 683565275, %v412
    %v414 = vshll.u32 683565275, %v411
    %v415 = vshrl.u32 2475754826, %v412
    %v416 = vor.u32 %v414, %v415
    %v417 = vshll.u32 2475754826, %v411
    %v418 = vshrl.u32 2131351028, %v412
    %v419 = vor.u32 %v417, %v418
    %v420 = vshll.u32 2131351028, %v411
    %v421 = vshrl.u32 2102212464, %v412
    %v422 = vor.u32 %v420, %v421
    %v423 = vshll.u32 2102212464, %v411
    %v424 = vshrl.u32 920167782, %v412
    %v425 = vor.u32 %v423, %v424
    %v426 = vshll.u32 920167782, %v411
    %v427 = vshrl.u32 1326507024, %v412
    %v428 = vor.u32 %v426, %v427
    %vm429 = vcmp.lt.s32.totalorder %v410, 1
    %vm430 = vcmp.lt.s32.totalorder %v410, 2
    %vm431 = vcmp.lt.s32.totalorder %v410, 3
    %vm432 = vcmp.lt.s32.totalorder %v410, 4
    %v433 = vsel %vm429, %v413, %v416
    %v434 = vsel %vm432, %v422, 2102212464
    %v435 = vsel %vm431, %v419, %v434
    %v436 = vsel %vm430, %v433, %v435
    %v437 = vsel %vm429, %v416, %v419
    %v438 = vsel %vm432, %v425, 920167782
    %v439 = vsel %vm431, %v422, %v438
    %v440 = vsel %vm430, %v437, %v439
    %v441 = vsel %vm429, %v419, %v422
    %v442 = vsel %vm432, %v428, 1326507024
    %v443 = vsel %vm431, %v425, %v442
    %v444 = vsel %vm430, %v441, %v443
    %v445 = vshll.u32 %v405, 8
    %v446 = vmul.u32.u64.compose %v445, %v444
    %v447 = vextract.low.u32 %v446
    %v448 = vextract.high.u32 %v446
    %v449 = vmul.u32.u64.compose %v445, %v440
    %v450 = vextract.low.u32 %v449
    %v451 = vextract.high.u32 %v449
    %v452 = vmul.u32 %v445, %v436
    %v453 = vadd.s32 %v448, %v450
    %vm454 = vc.u32 %v448, %v450
    %v455 = vadd.s32 %v451, 1
    %v456 = vsel %vm454, %v455, %v451
    %v457 = vadd.s32 %v452, %v456
    %v458 = vadd.s32 %v457, 536870912
    %v459 = vshrl.u32 %v458, 30
    %v460 = vshll.u32 %v459, 30
    %v461 = vsub.s32 %v457, %v460
    %vm462 = vcmp.lt.s32.totalorder %v461, 0
    %v463 = vsub.s32 0, %v461
    %v464 = vsel %vm462, %v463, %v461
    %v465 = vclz %v464
    %v466 = vsub.s32 %v465, 2
    %vm467 = vcmp.gt.s32.totalorder 0, %v466
    %v468 = vsel %vm467, 0, %v466
    %v469 = vsub.s32 32, %v468
    %v470 = vshll.u32 %v461, %v468
    %v471 = vshrl.u32 %v453, %v469
    %v472 = vor.u32 %v470, %v471
    %v473 = vsub.s32 4294967266, %v468
    %v474 = vadd.s32 %v473, 127
    %v475 = vshll.u32 %v474, 23
    %v476 = vor.u32 4788187, %v475
    %v477 = vand.u32 2147483647, %v476
    %v479 = vcvt.s32.f32 %v472
    %v480 = vmul.f32 %v479, %v477
    %v481 = vxor.u32 %v480, 2147483648
    %v482 = vsel %vm399, %v481, %v480
    %v483 = vsub.s32 4, %v459
    %v484 = vsel %vm399, %v483, %v459
    %v485 = vsel %vm398, %v86, %v482
    %v486 = vsel %vm398, 0, %v484
    %v487 = vcosq.f32.pop %v485
    %v488 = vsinq.f32.pop %v485
    %vm489 = vweird.f32 %v86
    %v490 = vadd.s32 %v486, 3
    %v491 = vand.u32 %v490, 3
    %vm492 = vcmp.lt.s32.totalorder %v491, 2
    %vm493 = vcmp.eq.s32.totalorder %v491, 0
    %v494 = vxor.u32 %v488, 2147483648
    %v495 = vsel %vm493, %v487, %v494
    %vm496 = vcmp.eq.s32.totalorder %v491, 2
    %v497 = vxor.u32 %v487, 2147483648
    %v498 = vsel %vm496, %v497, %v488
    %v499 = vsel %vm492, %v495, %v498
    %v500 = vsel %vm489, nan, %v499
    %v501 = vmul.f32 %v32, %v189
    %v502 = vmul.f32 %v33, %v292
    %v503 = vmul.f32 %v34, %v396
    %v504 = vmul.f32 %v35, %v500
    %v505 = vsub.f32 %v501, %v503
    %v506 = vsub.f32 %v502, %v504
    %v507 = vmul.f32 %v32, %v396
    %v508 = vmul.f32 %v33, %v500
    %v509 = vmul.f32 %v34, %v189
    %v510 = vmul.f32 %v35, %v292
    %v511 = vadd.f32 %v507, %v509
    %v512 = vadd.f32 %v508, %v510
    %515 = vrot.lane.b32.xlu0 %v511, 16
    %v516 = vpop.permute.xlu0 %515
    %517 = vrot.lane.b32.xlu0 %v512, 16
    %v518 = vpop.permute.xlu0 %517
    %vm521 = vcmask 130048
    %v522 = vsel %vm521, %v505, %v516
    %v523 = vsel %vm521, %v506, %v518
    %vm524 = vcmask 261120
    %525 = vst.msk [vmem:[#allocation5] sm:$0xff] %vm524, %v522
    %526 = vst.msk [vmem:[#allocation5 + $0x8] sm:$0xff] %vm524, %v523
    // Predicated region
    $region22: #{tpu_custom_call.1} parent=1 // pred_check
      _
    $region23: #{tpu_custom_call.1} parent=1 // pred_check_branch
      %528 = sbr.rel (0) target = $region25
    $region24: #{tpu_custom_call.1} parent=1 // pred_region
      %s530 = ssub.s32 256, 256
      %531 = vsyncadd [#allocation4], %s530
      %s532 = sshll.u32 [#allocation5], 4
      %s533 = int_to_ptr.vmem [resolvable:$true] %s532
      %538 = dma.vmem_to_hbm [thread:$0]  %s533, 256, %s4, [#allocation4], 128, 128, 8
    $region25: #{tpu_custom_call.1} parent=1 // pred_fallthru
      _
    // Predicated region
    $region26: #{tpu_custom_call.1} parent=1 // pred_check
      _
    $region27: #{tpu_custom_call.1} parent=1 // pred_check_branch
      %540 = sbr.rel (0) target = $region29
    $region28: #{tpu_custom_call.1} parent=1 // pred_region
      %541 = dma.done [#allocation4], 256
    $region29: #{tpu_custom_call.1} parent=1 // pred_fallthru
      _
    %542 = vsyncpa [#allocation3], 1
    %543 = vsyncpa [#allocation4], 1

</llo_original>
